<compile_context>
chip_gen: v6e
topology: v6e:2x2x1
jax: 0.10.0
libtpu: 0.0.40
codegen_flags: <defaults>
</compile_context>

<pallas_src>
import functools

import jax
import jax.numpy as jnp
from jax.experimental import pallas as pl
from jax.experimental.pallas import tpu as pltpu


def _round_up(x, m):
    return ((x + m - 1) // m) * m


@functools.lru_cache(maxsize=1)
def _vmem_budget():
    """Returns (vmem_limit_bytes, double-buffered tile working-set budget)."""
    phys = 64 << 20  # conservative default (v7x per-TC VMEM)
    try:
        info = pltpu.get_tpu_info()
        phys = int(getattr(info, "vmem_capacity_bytes", phys))
    except Exception:
        pass
    limit = max(min(phys - (16 << 20), 96 << 20), 32 << 20)
    return limit, int(limit * 0.7)


def _conv_bn_kernel(*refs, apply_relu, has_residual):
    """One (tm, tn) output tile: K-folded conv matmul (BN scale pre-folded into
    the weights, optional 1x1 shortcut merged into the same matmul) + bias
    (+ identity residual) + optional ReLU."""
    if has_residual:
        p_ref, w_ref, b_ref, r_ref, o_ref = refs
    else:
        p_ref, w_ref, b_ref, o_ref = refs

    acc = jnp.dot(p_ref[...], w_ref[...], preferred_element_type=jnp.float32)
    acc = acc + b_ref[...]                               # folded-BN bias (eval)
    if has_residual:
        acc = acc + r_ref[...].astype(jnp.float32)       # bf16 identity stream
    if apply_relu:
        acc = jnp.maximum(acc, 0.0)
    o_ref[...] = acc.astype(o_ref.dtype)


def conv_bn_pallas(x_nhwc, w_hwio, stride, scale, bias, *, apply_relu,
                   out_dtype=jnp.float32, residual=None, shortcut=None):
    """conv(stride, padding=(K-1)//2, bias=False) + folded BN
    (+ merged 1x1-conv shortcut | identity residual) (+ ReLU)."""
    N, H, W, Cin = x_nhwc.shape
    KH, KW, _, Cout = w_hwio.shape
    pad = (KH - 1) // 2
    Ho = (H + 2 * pad - KH) // stride + 1
    Wo = (W + 2 * pad - KW) // stride + 1
    M = N * Ho * Wo
    K = KH * KW * Cin

    # im2col with taps folded into the matmul K dimension; built in bf16 so the
    # HBM temporary is half-size.
    # TODO(synk): replace with an in-kernel halo / per-tap accumulation scheme.
    xp = jnp.pad(x_nhwc.astype(jnp.bfloat16),
                 ((0, 0), (pad, pad), (pad, pad), (0, 0)))
    cols = [xp[:, kh:kh + stride * (Ho - 1) + 1:stride,
                  kw:kw + stride * (Wo - 1) + 1:stride, :]
            for kh in range(KH) for kw in range(KW)]
    patches = jnp.concatenate(cols, axis=-1).reshape(M, K)

    # Fold the BN scale into the weights; only the bias add stays in-kernel.
    w_all = (w_hwio.reshape(K, Cout).astype(jnp.float32)
             * scale.astype(jnp.float32)[None, :])
    b_all = bias.astype(jnp.float32)

    if shortcut is not None:
        # Merge the 1x1-conv + BN shortcut into the SAME matmul: widen K.
        xs, wsc, ssc, bsc = shortcut
        patches = jnp.concatenate([patches, xs.astype(jnp.bfloat16)], axis=-1)
        w_all = jnp.concatenate(
            [w_all, wsc.astype(jnp.float32) * ssc.astype(jnp.float32)[None, :]],
            axis=0)
        b_all = b_all + bsc.astype(jnp.float32)
        K = K + xs.shape[1]

    # Lane/sublane-friendly padding and VMEM-budgeted tile sizes.
    K_pad = _round_up(K, 128)
    Cout_pad = _round_up(Cout, 128)
    out_itemsize = jnp.dtype(out_dtype).itemsize
    res_itemsize = 2 if residual is not None else 0
    vmem_limit, budget = _vmem_budget()

    # tn: full padded Cout whenever the double-buffered weight tile fits half
    # the budget (patches then stream from HBM exactly once).
    tn = Cout_pad
    if 2 * K_pad * tn * 2 > budget // 2:
        tn = 256 if (Cout_pad % 256 == 0
                     and 2 * K_pad * 256 * 2 <= budget // 2) else 128

    # tm: largest multiple of 8 fitting the remaining double-buffered budget.
    fixed = 2 * K_pad * tn * 2 + 2 * tn * 4                          # W + bias
    per_tm = 2 * K_pad * 2 + 2 * tn * (out_itemsize + res_itemsize)  # P + O(+R)
    tm = max((budget - fixed) // per_tm, 8)
    tm = min(tm, 1024, _round_up(M, 8))
    if M > 16:  # keep >=2 M tiles so the parallel axis shards across v7x's 2 TCs
        tm = min(tm, _round_up((M + 1) // 2, 8))
    tm = max(8 * (tm // 8), 8)
    M_pad = _round_up(M, tm)

    patches = jnp.pad(patches, ((0, M_pad - M), (0, K_pad - K)))
    w_all = jnp.pad(w_all, ((0, K_pad - K),
                            (0, Cout_pad - Cout))).astype(jnp.bfloat16)
    b_all = jnp.pad(b_all, (0, Cout_pad - Cout)).reshape(1, Cout_pad)

    # Grid: (Cout tiles, M tiles) -- M innermost so weight/bias stay resident.
    grid = (Cout_pad // tn, M_pad // tm)

    p_spec = pl.BlockSpec((tm, K_pad), lambda j, i: (i, 0))
    w_spec = pl.BlockSpec((K_pad, tn), lambda j, i: (0, j))
    b_spec = pl.BlockSpec((1, tn), lambda j, i: (0, j))
    o_spec = pl.BlockSpec((tm, tn), lambda j, i: (i, j))

    args = [patches, w_all, b_all]
    in_specs = [p_spec, w_spec, b_spec]

    has_residual = residual is not None
    if has_residual:
        res = jnp.pad(residual.astype(jnp.bfloat16),
                      ((0, M_pad - M), (0, Cout_pad - Cout)))
        args.append(res)
        in_specs.append(pl.BlockSpec((tm, tn), lambda j, i: (i, j)))

    flops = 2 * M_pad * K_pad * Cout_pad
    bytes_accessed = (M_pad * K_pad * 2 + K_pad * Cout_pad * 2 + Cout_pad * 4
                      + (M_pad * Cout_pad * 2 if has_residual else 0)
                      + M_pad * Cout_pad * out_itemsize)

    out = pl.pallas_call(
        functools.partial(_conv_bn_kernel, apply_relu=apply_relu,
                          has_residual=has_residual),
        out_shape=jax.ShapeDtypeStruct((M_pad, Cout_pad), out_dtype),
        grid=grid,
        in_specs=in_specs,
        out_specs=o_spec,
        compiler_params=pltpu.CompilerParams(
            dimension_semantics=("parallel", "parallel"),
            vmem_limit_bytes=vmem_limit),
        cost_estimate=pl.CostEstimate(flops=flops, transcendentals=0,
                                      bytes_accessed=bytes_accessed),
    )(*args)

    return out[:M, :Cout].reshape(N, Ho, Wo, Cout)


def _fold_bn(gamma, beta, mean, var, eps=1e-5):
    scale = gamma / jnp.sqrt(var + eps)
    bias = beta - mean * scale
    return scale, bias


class BasicBlockPallas:
    expansion = 1

    def __init__(self, key, in_planes, planes, stride=1):
        self.in_planes = in_planes
        self.planes = planes
        self.stride = stride
        self.has_shortcut = (stride != 1 or in_planes != self.expansion * planes)
        ks = jax.random.split(key, 16)

        def conv_w(k, cout, cin, kh, kw):
            # PyTorch OIHW init -> HWIO for channel-last compute.
            w = 0.1 * jax.random.normal(k, (cout, cin, kh, kw), jnp.float32)
            return jnp.transpose(w, (2, 3, 1, 0))

        def bn_params(k0, k1, k2, k3, c):
            gamma = 0.5 + jax.random.uniform(k0, (c,), jnp.float32)
            beta = 0.1 * jax.random.normal(k1, (c,), jnp.float32)
            mean = 0.1 * jax.random.normal(k2, (c,), jnp.float32)
            var = 0.5 + jax.random.uniform(k3, (c,), jnp.float32)
            return _fold_bn(gamma, beta, mean, var)

        self.w1 = conv_w(ks[0], planes, in_planes, 3, 3)
        self.s1, self.b1 = bn_params(ks[1], ks[2], ks[3], ks[4], planes)
        self.w2 = conv_w(ks[5], planes, planes, 3, 3)
        self.s2, self.b2 = bn_params(ks[6], ks[7], ks[8], ks[9], planes)
        if self.has_shortcut:
            self.wsc = conv_w(ks[10], self.expansion * planes, in_planes, 1, 1)
            self.ssc, self.bsc = bn_params(ks[11], ks[12], ks[13], ks[14],
                                           self.expansion * planes)
        self._fwd = jax.jit(self._forward)

    def _forward(self, x_nchw):
        x = jnp.transpose(x_nchw, (0, 2, 3, 1))  # NCHW -> NHWC
        Cin = x.shape[-1]

        # conv1 + bn1 + relu; intermediate kept in bf16 (halves out1 traffic
        # and the read traffic of the im2col that consumes it).
        out1 = conv_bn_pallas(x, self.w1, self.stride, self.s1, self.b1,
                              apply_relu=True, out_dtype=jnp.bfloat16)

        # conv2 + bn2 + (merged 1x1 shortcut | identity residual) + relu.
        if self.has_shortcut:
            xs = x[:, ::self.stride, ::self.stride, :].reshape(-1, Cin)
            wsc = self.wsc.reshape(Cin, self.expansion * self.planes)
            out = conv_bn_pallas(out1, self.w2, 1, self.s2, self.b2,
                                 apply_relu=True, out_dtype=jnp.float32,
                                 shortcut=(xs, wsc, self.ssc, self.bsc))
        else:
            out = conv_bn_pallas(out1, self.w2, 1, self.s2, self.b2,
                                 apply_relu=True, out_dtype=jnp.float32,
                                 residual=x.reshape(-1, Cin))

        return jnp.transpose(out, (0, 3, 1, 2))  # NHWC -> NCHW

    def __call__(self, x_nchw):
        return self._fwd(x_nchw)

    # ---- pure-JAX reference (correctness check only) ----
    def reference(self, x_nchw):
        x = jnp.transpose(x_nchw, (0, 2, 3, 1))

        def conv(x_, w_, stride, pad):
            return jax.lax.conv_general_dilated(
                x_, w_, window_strides=(stride, stride),
                padding=[(pad, pad), (pad, pad)],
                dimension_numbers=('NHWC', 'HWIO', 'NHWC'))

        if self.has_shortcut:
            sc = conv(x, self.wsc, self.stride, 0) * self.ssc + self.bsc
        else:
            sc = x
        out = jnp.maximum(conv(x, self.w1, self.stride, 1) * self.s1 + self.b1, 0.0)
        out = conv(out, self.w2, 1, 1) * self.s2 + self.b2
        out = jnp.maximum(out + sc, 0.0)
        return jnp.transpose(out, (0, 3, 1, 2))


if __name__ == "__main__":
    key = jax.random.PRNGKey(0)
    k_params, k_params2, k_x, k_x2 = jax.random.split(key, 4)

    # Case 1: stride-2 block with 1x1-conv shortcut (merged into conv2 matmul).
    block = BasicBlockPallas(k_params, 4, 8, stride=2)
    x = jax.random.normal(k_x, (2, 4, 16, 16), jnp.float32)  # NCHW
    out = jax.block_until_ready(block(x))
    ref = jax.block_until_ready(block.reference(x))
    assert out.shape == ref.shape == (2, 8, 8, 8), out.shape
    assert jnp.allclose(out, ref, atol=5e-2, rtol=5e-2), \
        float(jnp.max(jnp.abs(out - ref)))

    # Case 2: identity-shortcut block (bf16 residual streamed into the kernel).
    block2 = BasicBlockPallas(k_params2, 8, 8, stride=1)
    x2 = jax.random.normal(k_x2, (2, 8, 16, 16), jnp.float32)
    out2 = jax.block_until_ready(block2(x2))
    ref2 = jax.block_until_ready(block2.reference(x2))
    assert out2.shape == ref2.shape == (2, 8, 16, 16), out2.shape
    assert jnp.allclose(out2, ref2, atol=5e-2, rtol=5e-2), \
        float(jnp.max(jnp.abs(out2 - ref2)))

    print("KERNEL_OK")
</pallas_src>

<mosaic_0001>
module attributes {stable_mosaic.version = 11 : i64} {
  func.func @_conv_bn_kernel(%arg0: i32, %arg1: i32, %arg2: memref<64x128xbf16, #tpu.memory_space<vmem>>, %arg3: memref<128x128xbf16, #tpu.memory_space<vmem>>, %arg4: memref<1x128xf32, #tpu.memory_space<vmem>>, %arg5: memref<64x128xbf16, #tpu.memory_space<vmem>>) attributes {dimension_semantics = [#tpu.dimension_semantics<parallel>, #tpu.dimension_semantics<parallel>], iteration_bounds = array<i64: 1, 2>, scalar_prefetch = 0 : i64, scratch_operands = 0 : i64, tpu.core_type = #tpu.core_type<tc>, window_params = [{transform_indices = @transform_0, window_bounds = array<i64: 64, 128>}, {transform_indices = @transform_1, window_bounds = array<i64: 128, 128>}, {transform_indices = @transform_2, window_bounds = array<i64: 1, 128>}, {transform_indices = @transform_3, window_bounds = array<i64: 64, 128>}]} {
    %c0 = arith.constant 0 : index
    %c0_0 = arith.constant 0 : index
    %0 = vector.load %arg2[%c0, %c0_0] : memref<64x128xbf16, #tpu.memory_space<vmem>>, vector<64x128xbf16>
    %c0_1 = arith.constant 0 : index
    %c0_2 = arith.constant 0 : index
    %1 = vector.load %arg3[%c0_1, %c0_2] : memref<128x128xbf16, #tpu.memory_space<vmem>>, vector<128x128xbf16>
    %cst = arith.constant dense<0.000000e+00> : vector<64x128xf32>
    %2 = tpu.matmul %0, %1, %cst {dimension_numbers = #tpu.dot_dimension_numbers<[1], [0], [0], [1], [0, 0, 1, 1], [], []>} : vector<64x128xbf16>, vector<128x128xbf16>, vector<64x128xf32> -> vector<64x128xf32>
    %c0_3 = arith.constant 0 : index
    %c0_4 = arith.constant 0 : index
    %3 = vector.load %arg4[%c0_3, %c0_4] : memref<1x128xf32, #tpu.memory_space<vmem>>, vector<1x128xf32>
    %4 = vector.broadcast %3 : vector<1x128xf32> to vector<64x128xf32>
    %5 = arith.addf %2, %4 : vector<64x128xf32>
    %cst_5 = arith.constant 0.000000e+00 : f32
    %6 = vector.broadcast %cst_5 : f32 to vector<64x128xf32>
    %7 = arith.maximumf %5, %6 : vector<64x128xf32>
    %8 = arith.truncf %7 : vector<64x128xf32> to vector<64x128xbf16>
    %c0_6 = arith.constant 0 : index
    %c0_7 = arith.constant 0 : index
    %9 = vector.load %arg5[%c0_6, %c0_7] : memref<64x128xbf16, #tpu.memory_space<vmem>>, vector<64x128xbf16>
    tpu.vector_store %arg5[%c0_6, %c0_7], %8 {strides = array<i32>} : memref<64x128xbf16, #tpu.memory_space<vmem>>, vector<64x128xbf16>,
    return
  }
  func.func @transform_0(%arg0: i32, %arg1: i32) -> (i32, i32) {
    %c0_i32 = arith.constant 0 : i32
    %c0_i32_0 = arith.constant 0 : i32
    return %arg1, %c0_i32 : i32, i32
  }
  func.func @transform_1(%arg0: i32, %arg1: i32) -> (i32, i32) {
    %c0_i32 = arith.constant 0 : i32
    %c0_i32_0 = arith.constant 0 : i32
    return %c0_i32, %arg0 : i32, i32
  }
  func.func @transform_2(%arg0: i32, %arg1: i32) -> (i32, i32) {
    %c0_i32 = arith.constant 0 : i32
    %c0_i32_0 = arith.constant 0 : i32
    return %c0_i32, %arg0 : i32, i32
  }
  func.func @transform_3(%arg0: i32, %arg1: i32) -> (i32, i32) {
    %c0_i32 = arith.constant 0 : i32
    return %arg1, %arg0 : i32, i32
  }
}

module attributes {stable_mosaic.version = 11 : i64} {
  func.func @_conv_bn_kernel(%arg0: i32, %arg1: i32, %arg2: memref<64x128xbf16, #tpu.memory_space<vmem>>, %arg3: memref<128x128xbf16, #tpu.memory_space<vmem>>, %arg4: memref<1x128xf32, #tpu.memory_space<vmem>>, %arg5: memref<64x128xf32, #tpu.memory_space<vmem>>) attributes {dimension_semantics = [#tpu.dimension_semantics<parallel>, #tpu.dimension_semantics<parallel>], iteration_bounds = array<i64: 1, 2>, scalar_prefetch = 0 : i64, scratch_operands = 0 : i64, tpu.core_type = #tpu.core_type<tc>, window_params = [{transform_indices = @transform_0, window_bounds = array<i64: 64, 128>}, {transform_indices = @transform_1, window_bounds = array<i64: 128, 128>}, {transform_indices = @transform_2, window_bounds = array<i64: 1, 128>}, {transform_indices = @transform_3, window_bounds = array<i64: 64, 128>}]} {
    %c0 = arith.constant 0 : index
    %c0_0 = arith.constant 0 : index
    %0 = vector.load %arg2[%c0, %c0_0] : memref<64x128xbf16, #tpu.memory_space<vmem>>, vector<64x128xbf16>
    %c0_1 = arith.constant 0 : index
    %c0_2 = arith.constant 0 : index
    %1 = vector.load %arg3[%c0_1, %c0_2] : memref<128x128xbf16, #tpu.memory_space<vmem>>, vector<128x128xbf16>
    %cst = arith.constant dense<0.000000e+00> : vector<64x128xf32>
    %2 = tpu.matmul %0, %1, %cst {dimension_numbers = #tpu.dot_dimension_numbers<[1], [0], [0], [1], [0, 0, 1, 1], [], []>} : vector<64x128xbf16>, vector<128x128xbf16>, vector<64x128xf32> -> vector<64x128xf32>
    %c0_3 = arith.constant 0 : index
    %c0_4 = arith.constant 0 : index
    %3 = vector.load %arg4[%c0_3, %c0_4] : memref<1x128xf32, #tpu.memory_space<vmem>>, vector<1x128xf32>
    %4 = vector.broadcast %3 : vector<1x128xf32> to vector<64x128xf32>
    %5 = arith.addf %2, %4 : vector<64x128xf32>
    %cst_5 = arith.constant 0.000000e+00 : f32
    %6 = vector.broadcast %cst_5 : f32 to vector<64x128xf32>
    %7 = arith.maximumf %5, %6 : vector<64x128xf32>
    %c0_6 = arith.constant 0 : index
    %c0_7 = arith.constant 0 : index
    %8 = vector.load %arg5[%c0_6, %c0_7] : memref<64x128xf32, #tpu.memory_space<vmem>>, vector<64x128xf32>
    tpu.vector_store %arg5[%c0_6, %c0_7], %7 {strides = array<i32>} : memref<64x128xf32, #tpu.memory_space<vmem>>, vector<64x128xf32>,
    return
  }
  func.func @transform_0(%arg0: i32, %arg1: i32) -> (i32, i32) {
    %c0_i32 = arith.constant 0 : i32
    %c0_i32_0 = arith.constant 0 : i32
    return %arg1, %c0_i32 : i32, i32
  }
  func.func @transform_1(%arg0: i32, %arg1: i32) -> (i32, i32) {
    %c0_i32 = arith.constant 0 : i32
    %c0_i32_0 = arith.constant 0 : i32
    return %c0_i32, %arg0 : i32, i32
  }
  func.func @transform_2(%arg0: i32, %arg1: i32) -> (i32, i32) {
    %c0_i32 = arith.constant 0 : i32
    %c0_i32_0 = arith.constant 0 : i32
    return %c0_i32, %arg0 : i32, i32
  }
  func.func @transform_3(%arg0: i32, %arg1: i32) -> (i32, i32) {
    %c0_i32 = arith.constant 0 : i32
    return %arg1, %arg0 : i32, i32
  }
}

</mosaic_0001>

<llo_original>
// kernel: _forward.2
$region0: #{_forward.2}
  #allocation0 [shape = 'u32[]', space=smem, size = 0x4, offset = 0x4, fixed_abs, tag = 'smem constant byte address 0x4 - core index']
  #allocation1 [shape = 'u32[144,128]{1,0:T(1,128)}', space=vmem, size = 0x12000, scoped, tag = 'internal scratch']
  %s0 = inlined_call_operand.vmem [shape: bf16[128,128], index: 0, kind: input, shape index: {}]
  %s1 = inlined_call_operand.vmem [shape: bf16[128,128], index: 1, kind: input, shape index: {}]
  %s2 = inlined_call_operand.vmem [shape: f32[1,128], index: 2, kind: input, shape index: {}]
  %s3 = inlined_call_operand.vmem [shape: bf16[128,128], index: 3, kind: output, shape index: {}]
  %s4 = sld [smem:[#allocation0]]
  $region45: #{_forward.2} parent=0
    _
  %s6 = ssub.s32 1, %s4
  %s7 = scalar_select 0, %s6, %s4
  loop: start=0, step=1, limit=4
  $region2: #{_forward.2} parent=0 // loop_pre_header
    _
  $region3: #{_forward.2} parent=0 // loop_header
    %s9 = sphi 0, %s13
    %p10 = scmp.ge.s32.totalorder %s9, 4
    %s16 = sphi 0, %s28
    %s17 = sphi 0, %s24
    %s18 = sphi 0, %s16
    %s19 = sphi 0, %s17
    %s20 = sphi 0, %s18
    %s21 = sphi 0, %s19
    %s31 = sphi 0, %s33
    %s34 = sphi 0, %s31
    %s35 = sphi 0, %s34
    %s51 = sphi 0, %s35
    %s57 = sphi 0, %s59
    %s60 = sphi 0, %s57
    %s61 = sphi 0, %s60
    %s77 = sphi 0, %s61
    %s83 = sphi 0, %s85
    %s86 = sphi 0, %s83
    %s87 = sphi 0, %s86
    %s103 = sphi 0, %s87
    %s111 = sphi 0, %s113
    %s114 = sphi 0, %s111
    %s115 = sphi 0, %s114
    %s131 = sphi 0, %s115
  $region4: #{_forward.2} parent=0 // loop_header_branch
    %12 = sbr.rel (%p10) target = $region8
  $region5: #{_forward.2} parent=0 // loop_body
    %s14 = ssub.s32 %s9, 1
    %s15 = ssub.s32 %s9, 2
    %s22 = sadd.s32 1, %s17
    %p23 = scmp.ge.s32.totalorder %s22, 2
    %s24 = scalar_select %p23, 0, %s22
    %s25 = sadd.s32 1, %s16
    %s26 = scalar_select %p23, %s25, %s16
    %p27 = scmp.ge.s32.totalorder %s26, 1
    %s28 = scalar_select %p27, 0, %s26
    %s29 = ssub.s32 %s17, %s24
    %p30 = scmp.eq.s32.totalorder %s29, 0
    %s32 = sadd.s32 %s31, 1
    %s33 = scalar_select %p30, %s31, %s32
    %p36 = pneg %p30
    %p37 = scmp.eq.s32.totalorder %s9, 1
    %p38 = por %p36, %p37
    %p39 = scmp.ne.s32.totalorder %s31, %s34
    %p40 = scmp.eq.s32.totalorder %s9, 0
    %p41 = por %p39, %p40
    %p42 = scmp.ne.s32.totalorder %s31, %s34
    %p43 = scmp.eq.s32.totalorder %s14, 1
    %p44 = por %p42, %p43
    %p45 = scmp.ne.s32.totalorder %s34, %s35
    %p46 = scmp.eq.s32.totalorder %s14, 0
    %p47 = por %p45, %p46
    %p48 = scmp.ne.s32.totalorder %s34, %s35
    %p49 = scmp.eq.s32.totalorder %s15, 1
    %p50 = por %p48, %p49
    %p52 = scmp.ne.s32.totalorder %s35, %s51
    %p53 = scmp.eq.s32.totalorder %s15, 0
    %p54 = por %p52, %p53
    %s55 = ssub.s32 %s16, %s28
    %p56 = scmp.eq.s32.totalorder %s55, 0
    %s58 = sadd.s32 %s57, 1
    %s59 = scalar_select %p56, %s57, %s58
    %p62 = pneg %p56
    %p63 = scmp.eq.s32.totalorder %s9, 1
    %p64 = por %p62, %p63
    %p65 = scmp.ne.s32.totalorder %s57, %s60
    %p66 = scmp.eq.s32.totalorder %s9, 0
    %p67 = por %p65, %p66
    %p68 = scmp.ne.s32.totalorder %s57, %s60
    %p69 = scmp.eq.s32.totalorder %s14, 1
    %p70 = por %p68, %p69
    %p71 = scmp.ne.s32.totalorder %s60, %s61
    %p72 = scmp.eq.s32.totalorder %s14, 0
    %p73 = por %p71, %p72
    %p74 = scmp.ne.s32.totalorder %s60, %s61
    %p75 = scmp.eq.s32.totalorder %s15, 1
    %p76 = por %p74, %p75
    %p78 = scmp.ne.s32.totalorder %s61, %s77
    %p79 = scmp.eq.s32.totalorder %s15, 0
    %p80 = por %p78, %p79
    %s81 = ssub.s32 %s16, %s28
    %p82 = scmp.eq.s32.totalorder %s81, 0
    %s84 = sadd.s32 %s83, 1
    %s85 = scalar_select %p82, %s83, %s84
    %p88 = pneg %p82
    %p89 = scmp.eq.s32.totalorder %s9, 1
    %p90 = por %p88, %p89
    %p91 = scmp.ne.s32.totalorder %s83, %s86
    %p92 = scmp.eq.s32.totalorder %s9, 0
    %p93 = por %p91, %p92
    %p94 = scmp.ne.s32.totalorder %s83, %s86
    %p95 = scmp.eq.s32.totalorder %s14, 1
    %p96 = por %p94, %p95
    %p97 = scmp.ne.s32.totalorder %s86, %s87
    %p98 = scmp.eq.s32.totalorder %s14, 0
    %p99 = por %p97, %p98
    %p100 = scmp.ne.s32.totalorder %s86, %s87
    %p101 = scmp.eq.s32.totalorder %s15, 1
    %p102 = por %p100, %p101
    %p104 = scmp.ne.s32.totalorder %s87, %s103
    %p105 = scmp.eq.s32.totalorder %s15, 0
    %p106 = por %p104, %p105
    %s107 = ssub.s32 %s17, %s24
    %s108 = ssub.s32 %s16, %s28
    %s109 = sor.u32 %s107, %s108
    %p110 = scmp.eq.s32.totalorder %s109, 0
    %s112 = sadd.s32 %s111, 1
    %s113 = scalar_select %p110, %s111, %s112
    %p116 = pneg %p110
    %p117 = scmp.eq.s32.totalorder %s9, 1
    %p118 = por %p116, %p117
    %p119 = scmp.ne.s32.totalorder %s111, %s114
    %p120 = scmp.eq.s32.totalorder %s9, 0
    %p121 = por %p119, %p120
    %p122 = scmp.ne.s32.totalorder %s111, %s114
    %p123 = scmp.eq.s32.totalorder %s14, 1
    %p124 = por %p122, %p123
    %p125 = scmp.ne.s32.totalorder %s114, %s115
    %p126 = scmp.eq.s32.totalorder %s14, 0
    %p127 = por %p125, %p126
    %p128 = scmp.ne.s32.totalorder %s114, %s115
    %p129 = scmp.eq.s32.totalorder %s15, 1
    %p130 = por %p128, %p129
    %p132 = scmp.ne.s32.totalorder %s115, %s131
    %p133 = scmp.eq.s32.totalorder %s15, 0
    %p134 = por %p132, %p133
    %p135 = scmp.le.s32.totalorder 1, %s9
    %p136 = scmp.lt.s32.totalorder %s9, 3
    %p137 = pnand %p135, %p136
    %p138 = pneg %p137
    // Predicated region
    $region9: #{_forward.2} parent=5 // pred_check
      _
    $region10: #{_forward.2} parent=5 // pred_check_branch
      %140 = sbr.rel (%p137) target = $region12
    $region11: #{_forward.2} parent=5 // pred_region
      %s141 = ssub.s32 %s9, 1
      // Predicated region
      $region13: #{_forward.2} parent=11 // pred_check
        %p142 = pneg %p73
      $region14: #{_forward.2} parent=11 // pred_check_branch
        %144 = sbr.rel (%p142) target = $region16
      $region15: #{_forward.2} parent=11 // pred_region
        %p145 = scmp.lt.s32.totalorder %s18, 0
        %s146 = scalar_select %p145, %s18, 0
        %s147 = smul.addr %s146, 4
        %s148 = scalar_lea.vmem %s1, %s147
      $region16: #{_forward.2} parent=11 // pred_fallthru
        _
      // Predicated region
      $region17: #{_forward.2} parent=11 // pred_check
        %p149 = pneg %p99
      $region18: #{_forward.2} parent=11 // pred_check_branch
        %151 = sbr.rel (%p149) target = $region20
      $region19: #{_forward.2} parent=11 // pred_region
        %p152 = scmp.lt.s32.totalorder %s18, 0
        %s153 = scalar_select %p152, %s18, 0
        %s154 = scalar_lea.vmem %s2, %s153
      $region20: #{_forward.2} parent=11 // pred_fallthru
        _
    $region12: #{_forward.2} parent=5 // pred_fallthru
      _
    %p155 = scmp.lt.s32.totalorder %s9, 2
    // Predicated region
    $region21: #{_forward.2} parent=5 // pred_check
      %p156 = pneg %p155
    $region22: #{_forward.2} parent=5 // pred_check_branch
      %158 = sbr.rel (%p156) target = $region24
    $region23: #{_forward.2} parent=5 // pred_region
      // Predicated region
      $region25: #{_forward.2} parent=23 // pred_check
        %p159 = pneg %p41
      $region26: #{_forward.2} parent=23 // pred_check_branch
        %161 = sbr.rel (%p159) target = $region28
      $region27: #{_forward.2} parent=23 // pred_region
        %s162 = smul.u32 8, %s17
        %p163 = scmp.lt.s32.totalorder %s162, 15
        %s164 = scalar_select %p163, %s162, 15
        %s165 = smul.addr %s164, 4
        %s166 = scalar_lea.vmem %s0, %s165
        %s167 = smul.u32 8, %s17
      $region28: #{_forward.2} parent=23 // pred_fallthru
        _
    $region24: #{_forward.2} parent=5 // pred_fallthru
      _
    %p168 = scmp.le.s32.totalorder 1, %s9
    %p169 = scmp.lt.s32.totalorder %s9, 3
    %p170 = pnand %p168, %p169
    %p171 = pneg %p170
    // Predicated region
    $region29: #{_forward.2} parent=5 // pred_check
      _
    $region30: #{_forward.2} parent=5 // pred_check_branch
      %173 = sbr.rel (%p170) target = $region32
    $region31: #{_forward.2} parent=5 // pred_region
      %s174 = ssub.s32 %s9, 1
      %s175 = smul.u32 8, %s19
      %p176 = scmp.lt.s32.totalorder %s175, 15
      %s177 = scalar_select %p176, %s175, 15
      %s178 = smul.addr %s177, 4
      %s179 = scalar_lea.vmem %s0, %s178
      %p180 = pneg %p47
      %p181 = pneg %p44
      %p182 = scmp.lt.s32.totalorder %s18, 0
      %s183 = scalar_select %p182, %s18, 0
      %s184 = smul.addr %s183, 4
      %s185 = scalar_lea.vmem %s1, %s184
      %p186 = pneg %p73
      %p187 = pneg %p70
      %p188 = scmp.lt.s32.totalorder %s18, 0
      %s189 = scalar_select %p188, %s18, 0
      %s190 = scalar_lea.vmem %s2, %s189
      %p191 = pneg %p99
      %p192 = pneg %p96
      %p193 = pneg %p127
      %p194 = pneg %p124
      %s195 = smul.u32 8, %s19
      %p196 = scmp.lt.s32.totalorder %s195, 15
      %s197 = scalar_select %p196, %s195, 15
      %p198 = scmp.lt.s32.totalorder %s18, 0
      %s199 = scalar_select %p198, %s18, 0
      %s200 = sadd.s32 %s199, %s197
      %s201 = smul.addr %s200, 4
      %s202 = scalar_lea.vmem %s3, %s201
      %s203 = smul.u32 8, %s19
      %p204 = scmp.lt.s32.totalorder %s203, 15
      %s205 = scalar_select %p204, %s203, 15
      %s206 = smul.addr %s205, 4
      %s207 = scalar_lea.vmem %s0, %s206
      %s208 = smul.u32 8, %s19
      %p209 = scmp.lt.s32.totalorder %s18, 0
      %s210 = scalar_select %p209, %s18, 0
      %s211 = smul.addr %s210, 4
      %s212 = scalar_lea.vmem %s1, %s211
      %p213 = scmp.lt.s32.totalorder %s18, 0
      %s214 = scalar_select %p213, %s18, 0
      %s215 = scalar_lea.vmem %s2, %s214
      %s216 = smul.u32 8, %s19
      %p217 = scmp.lt.s32.totalorder %s216, 15
      %s218 = scalar_select %p217, %s216, 15
      %p219 = scmp.lt.s32.totalorder %s18, 0
      %s220 = scalar_select %p219, %s18, 0
      %s221 = sadd.s32 %s220, %s218
      %s222 = smul.addr %s221, 4
      %s223 = scalar_lea.vmem %s3, %s222
      %s224 = smul.u32 8, %s19
      %v226 = vld [vmem:[%s207] sm:$0xf]
      %v227 = vld [vmem:[%s207 + $0x4] sm:$0xf]
      %v228 = vld [vmem:[%s207 + $0x8] sm:$0xf]
      %v229 = vld [vmem:[%s207 + $0xc] sm:$0xf]
      %v230 = vld [vmem:[%s207 + $0x10] sm:$0xf]
      %v231 = vld [vmem:[%s207 + $0x14] sm:$0xf]
      %v232 = vld [vmem:[%s207 + $0x18] sm:$0xf]
      %v233 = vld [vmem:[%s207 + $0x1c] sm:$0xf]
      %v234 = vld [vmem:[%s212] sm:$0xf]
      %v235 = vld [vmem:[%s212 + $0x4] sm:$0xf]
      %v236 = vld [vmem:[%s212 + $0x8] sm:$0xf]
      %v237 = vld [vmem:[%s212 + $0xc] sm:$0xf]
      %v238 = vld [vmem:[%s212 + $0x10] sm:$0xf]
      %v239 = vld [vmem:[%s212 + $0x14] sm:$0xf]
      %v240 = vld [vmem:[%s212 + $0x18] sm:$0xf]
      %v241 = vld [vmem:[%s212 + $0x1c] sm:$0xf]
      %v242 = vld [vmem:[%s212 + $0x20] sm:$0xf]
      %v243 = vld [vmem:[%s212 + $0x24] sm:$0xf]
      %v244 = vld [vmem:[%s212 + $0x28] sm:$0xf]
      %v245 = vld [vmem:[%s212 + $0x2c] sm:$0xf]
      %v246 = vld [vmem:[%s212 + $0x30] sm:$0xf]
      %v247 = vld [vmem:[%s212 + $0x34] sm:$0xf]
      %v248 = vld [vmem:[%s212 + $0x38] sm:$0xf]
      %v249 = vld [vmem:[%s212 + $0x3c] sm:$0xf]
      %v250 = vld [vmem:[%s215] sm:$0x1]
      %v252 = vlaneseq
      %v253 = vshrl.u32 %v252, 7
      %v254 = vsub.s32 0, %v253
      %v255 = vrot.slane %v250, %v254
      %v265 = vunpack.c.l.b16 %v226
      %v266 = vunpack.c.l.b16 %v227
      %v267 = vunpack.c.l.b16 %v228
      %v268 = vunpack.c.l.b16 %v229
      %v269 = vunpack.c.l.b16 %v230
      %v270 = vunpack.c.l.b16 %v231
      %v271 = vunpack.c.l.b16 %v232
      %v272 = vunpack.c.l.b16 %v233
      %v273 = vpack.c.b16 %v266, %v265
      %v274 = vpack.c.b16 %v268, %v267
      %v275 = vpack.c.b16 %v270, %v269
      %v276 = vpack.c.b16 %v272, %v271
      %v297 = vunpack.c.l.b16 %v234
      %v298 = vunpack.c.l.b16 %v235
      %v299 = vunpack.c.l.b16 %v236
      %v300 = vunpack.c.l.b16 %v237
      %v301 = vunpack.c.l.b16 %v238
      %v302 = vunpack.c.l.b16 %v239
      %v303 = vunpack.c.l.b16 %v240
      %v304 = vunpack.c.l.b16 %v241
      %v305 = vunpack.c.l.b16 %v242
      %v306 = vunpack.c.l.b16 %v243
      %v307 = vunpack.c.l.b16 %v244
      %v308 = vunpack.c.l.b16 %v245
      %v309 = vunpack.c.l.b16 %v246
      %v310 = vunpack.c.l.b16 %v247
      %v311 = vunpack.c.l.b16 %v248
      %v312 = vunpack.c.l.b16 %v249
      %v313 = vpack.c.b16 %v298, %v297
      %v314 = vpack.c.b16 %v300, %v299
      %v315 = vpack.c.b16 %v302, %v301
      %v316 = vpack.c.b16 %v304, %v303
      %v317 = vpack.c.b16 %v306, %v305
      %v318 = vpack.c.b16 %v308, %v307
      %v319 = vpack.c.b16 %v310, %v309
      %v320 = vpack.c.b16 %v312, %v311
      %329 = vmatprep.subr.bf16.mxu0 0
      %330 = vmatpush1.bf16.msra.mxu0 %v320
      %331 = vmatprep.subr.bf16.mxu0 0
      %332 = vmatpush1.bf16.msra.mxu0 %v319
      %333 = vmatprep.subr.bf16.mxu0 0
      %334 = vmatpush1.bf16.msra.mxu0 %v318
      %335 = vmatprep.subr.bf16.mxu0 0
      %336 = vmatpush1.bf16.msra.mxu0 %v317
      %337 = vmatprep.subr.bf16.mxu0 0
      %338 = vmatpush1.bf16.msra.mxu0 %v316
      %339 = vmatprep.subr.bf16.mxu0 0
      %340 = vmatpush1.bf16.msra.mxu0 %v315
      %341 = vmatprep.subr.bf16.mxu0 0
      %342 = vmatpush1.bf16.msra.mxu0 %v314
      %343 = vmatprep.subr.bf16.mxu0 0
      %344 = vmatpush1.bf16.msra.mxu0 %v313
      %345 = vmatprep.subr.bf16.mxu0 0
      %346 = vmatpush2.bf16.msra.mxu0 0
      %347 = vmatprep.subr.bf16.mxu0 0
      %348 = vmatpush2.bf16.msra.mxu0 0
      %349 = vmatprep.subr.bf16.mxu0 0
      %350 = vmatpush2.bf16.msra.mxu0 0
      %351 = vmatprep.subr.bf16.mxu0 0
      %352 = vmatpush2.bf16.msra.mxu0 0
      %353 = vmatprep.subr.bf16.mxu0 0
      %354 = vmatpush2.bf16.msra.mxu0 0
      %355 = vmatprep.subr.bf16.mxu0 0
      %356 = vmatpush2.bf16.msra.mxu0 0
      %357 = vmatprep.subr.bf16.mxu0 0
      %358 = vmatpush2.bf16.msra.mxu0 0
      %359 = vmatprep.subr.bf16.mxu0 0
      %360 = vmatpush2.bf16.msra.mxu0 0
      %361 = vmatprep.mubr.bf16.mxu0 0
      %362 = vmatmul.mubr.bf16.gmra.mxu0 %v273
      %v363 = vpop.f32.mrf.mxu0
      %v364 = vadd.f32 %v255, %v363
      %v365 = vpop.f32.mrf.mxu0
      %v366 = vpop.f32.mrf.mxu0
      %v367 = vadd.f32 %v255, %v366
      %v368 = vpop.f32.mrf.mxu0
      %369 = vmatprep.mubr.bf16.mxu0 0
      %370 = vmatmul.mubr.bf16.gmra.mxu0 %v274
      %v371 = vpop.f32.mrf.mxu0
      %v372 = vadd.f32 %v255, %v371
      %v373 = vpop.f32.mrf.mxu0
      %v374 = vpop.f32.mrf.mxu0
      %v375 = vadd.f32 %v255, %v374
      %v376 = vpop.f32.mrf.mxu0
      %377 = vmatprep.mubr.bf16.mxu0 0
      %378 = vmatmul.mubr.bf16.gmra.mxu0 %v275
      %v379 = vpop.f32.mrf.mxu0
      %v380 = vadd.f32 %v255, %v379
      %v381 = vpop.f32.mrf.mxu0
      %v382 = vpop.f32.mrf.mxu0
      %v383 = vadd.f32 %v255, %v382
      %v384 = vpop.f32.mrf.mxu0
      %385 = vmatprep.mubr.bf16.mxu0 0
      %386 = vmatmul.mubr.bf16.gmra.mxu0 %v276
      %v387 = vpop.f32.mrf.mxu0
      %v388 = vadd.f32 %v255, %v387
      %v389 = vpop.f32.mrf.mxu0
      %v390 = vpop.f32.mrf.mxu0
      %v391 = vadd.f32 %v255, %v390
      %v392 = vpop.f32.mrf.mxu0
      %393 = vdwg.mxu0
      %v394 = vmax.f32 %v364, 0.0
      %v395 = vmax.f32 %v367, 0.0
      %v396 = vmax.f32 %v372, 0.0
      %v397 = vmax.f32 %v375, 0.0
      %v398 = vmax.f32 %v380, 0.0
      %v399 = vmax.f32 %v383, 0.0
      %v400 = vmax.f32 %v388, 0.0
      %v401 = vmax.f32 %v391, 0.0
      %v402 = vpack.c.bf16 %v395, %v394
      %v403 = vpack.c.bf16 %v397, %v396
      %v404 = vpack.c.bf16 %v399, %v398
      %v405 = vpack.c.bf16 %v401, %v400
      %v410 = vunpack.c.l.b16 %v402
      %v411 = vunpack.c.h.b16 %v402
      %v412 = vunpack.c.l.b16 %v403
      %v413 = vunpack.c.h.b16 %v403
      %v414 = vunpack.c.l.b16 %v404
      %v415 = vunpack.c.h.b16 %v404
      %v416 = vunpack.c.l.b16 %v405
      %v417 = vunpack.c.h.b16 %v405
      %v418 = vpack.c.b16 %v410, %v410
      %v419 = vpack.c.b16 %v411, %v411
      %v420 = vpack.c.b16 %v412, %v412
      %v421 = vpack.c.b16 %v413, %v413
      %v422 = vpack.c.b16 %v414, %v414
      %v423 = vpack.c.b16 %v415, %v415
      %v424 = vpack.c.b16 %v416, %v416
      %v425 = vpack.c.b16 %v417, %v417
      %434 = vst [vmem:[%s223] sm:$0xf] %v418
      %435 = vst [vmem:[%s223 + $0x4] sm:$0xf] %v419
      %436 = vst [vmem:[%s223 + $0x8] sm:$0xf] %v420
      %437 = vst [vmem:[%s223 + $0xc] sm:$0xf] %v421
      %438 = vst [vmem:[%s223 + $0x10] sm:$0xf] %v422
      %439 = vst [vmem:[%s223 + $0x14] sm:$0xf] %v423
      %440 = vst [vmem:[%s223 + $0x18] sm:$0xf] %v424
      %441 = vst [vmem:[%s223 + $0x1c] sm:$0xf] %v425
      %s442 = smul.u32 8, %s19
      %p443 = scmp.lt.s32.totalorder %s442, 15
      %s444 = scalar_select %p443, %s442, 15
      %p445 = scmp.lt.s32.totalorder %s18, 0
      %s446 = scalar_select %p445, %s18, 0
      %s447 = sadd.s32 %s446, %s444
      %s448 = smul.addr %s447, 4
      %s449 = scalar_lea.vmem %s3, %s448
      // Predicated region
      $region33: #{_forward.2} parent=31 // pred_check
        %p450 = pneg %p124
      $region34: #{_forward.2} parent=31 // pred_check_branch
        %452 = sbr.rel (%p450) target = $region36
      $region35: #{_forward.2} parent=31 // pred_region
        %s453 = smul.u32 8, %s19
      $region36: #{_forward.2} parent=31 // pred_fallthru
        _
    $region32: #{_forward.2} parent=5 // pred_fallthru
      _
    %p454 = scmp.le.s32.totalorder 2, %s9
    // Predicated region
    $region37: #{_forward.2} parent=5 // pred_check
      %p455 = pneg %p454
    $region38: #{_forward.2} parent=5 // pred_check_branch
      %457 = sbr.rel (%p455) target = $region40
    $region39: #{_forward.2} parent=5 // pred_region
      %s458 = ssub.s32 %s9, 2
      // Predicated region
      $region41: #{_forward.2} parent=39 // pred_check
        %p459 = pneg %p130
      $region42: #{_forward.2} parent=39 // pred_check_branch
        %461 = sbr.rel (%p459) target = $region44
      $region43: #{_forward.2} parent=39 // pred_region
        %s462 = smul.u32 8, %s21
        %p463 = scmp.lt.s32.totalorder %s462, 15
        %s464 = scalar_select %p463, %s462, 15
        %p465 = scmp.lt.s32.totalorder %s20, 0
        %s466 = scalar_select %p465, %s20, 0
        %s467 = sadd.s32 %s466, %s464
        %s468 = smul.addr %s467, 4
        %s469 = scalar_lea.vmem %s3, %s468
      $region44: #{_forward.2} parent=39 // pred_fallthru
        _
    $region40: #{_forward.2} parent=5 // pred_fallthru
      _
  $region6: #{_forward.2} parent=0 // loop_footer
    %s13 = sadd.s32 1, %s9
  $region7: #{_forward.2} parent=0 // loop_footer_branch
    %8 = sbr.rel target = $region3
  $region8: #{_forward.2} parent=0 // loop_exit
    _

// kernel: _forward.3
$region0: #{_forward.3}
  #allocation0 [shape = 'u32[]', space=smem, size = 0x4, offset = 0x4, fixed_abs, tag = 'smem constant byte address 0x4 - core index']
  #allocation1 [shape = 'u32[144,128]{1,0:T(1,128)}', space=vmem, size = 0x12000, scoped, tag = 'internal scratch']
  %s0 = inlined_call_operand.vmem [shape: bf16[128,128], index: 0, kind: input, shape index: {}]
  %s1 = inlined_call_operand.vmem [shape: bf16[128,128], index: 1, kind: input, shape index: {}]
  %s2 = inlined_call_operand.vmem [shape: f32[1,128], index: 2, kind: input, shape index: {}]
  %s3 = inlined_call_operand.vmem [shape: f32[128,128], index: 3, kind: output, shape index: {}]
  %s4 = sld [smem:[#allocation0]]
  $region45: #{_forward.3} parent=0
    _
  %s6 = ssub.s32 1, %s4
  %s7 = scalar_select 0, %s6, %s4
  loop: start=0, step=1, limit=4
  $region2: #{_forward.3} parent=0 // loop_pre_header
    _
  $region3: #{_forward.3} parent=0 // loop_header
    %s9 = sphi 0, %s13
    %p10 = scmp.ge.s32.totalorder %s9, 4
    %s16 = sphi 0, %s28
    %s17 = sphi 0, %s24
    %s18 = sphi 0, %s16
    %s19 = sphi 0, %s17
    %s20 = sphi 0, %s18
    %s21 = sphi 0, %s19
    %s31 = sphi 0, %s33
    %s34 = sphi 0, %s31
    %s35 = sphi 0, %s34
    %s51 = sphi 0, %s35
    %s57 = sphi 0, %s59
    %s60 = sphi 0, %s57
    %s61 = sphi 0, %s60
    %s77 = sphi 0, %s61
    %s83 = sphi 0, %s85
    %s86 = sphi 0, %s83
    %s87 = sphi 0, %s86
    %s103 = sphi 0, %s87
    %s111 = sphi 0, %s113
    %s114 = sphi 0, %s111
    %s115 = sphi 0, %s114
    %s131 = sphi 0, %s115
  $region4: #{_forward.3} parent=0 // loop_header_branch
    %12 = sbr.rel (%p10) target = $region8
  $region5: #{_forward.3} parent=0 // loop_body
    %s14 = ssub.s32 %s9, 1
    %s15 = ssub.s32 %s9, 2
    %s22 = sadd.s32 1, %s17
    %p23 = scmp.ge.s32.totalorder %s22, 2
    %s24 = scalar_select %p23, 0, %s22
    %s25 = sadd.s32 1, %s16
    %s26 = scalar_select %p23, %s25, %s16
    %p27 = scmp.ge.s32.totalorder %s26, 1
    %s28 = scalar_select %p27, 0, %s26
    %s29 = ssub.s32 %s17, %s24
    %p30 = scmp.eq.s32.totalorder %s29, 0
    %s32 = sadd.s32 %s31, 1
    %s33 = scalar_select %p30, %s31, %s32
    %p36 = pneg %p30
    %p37 = scmp.eq.s32.totalorder %s9, 1
    %p38 = por %p36, %p37
    %p39 = scmp.ne.s32.totalorder %s31, %s34
    %p40 = scmp.eq.s32.totalorder %s9, 0
    %p41 = por %p39, %p40
    %p42 = scmp.ne.s32.totalorder %s31, %s34
    %p43 = scmp.eq.s32.totalorder %s14, 1
    %p44 = por %p42, %p43
    %p45 = scmp.ne.s32.totalorder %s34, %s35
    %p46 = scmp.eq.s32.totalorder %s14, 0
    %p47 = por %p45, %p46
    %p48 = scmp.ne.s32.totalorder %s34, %s35
    %p49 = scmp.eq.s32.totalorder %s15, 1
    %p50 = por %p48, %p49
    %p52 = scmp.ne.s32.totalorder %s35, %s51
    %p53 = scmp.eq.s32.totalorder %s15, 0
    %p54 = por %p52, %p53
    %s55 = ssub.s32 %s16, %s28
    %p56 = scmp.eq.s32.totalorder %s55, 0
    %s58 = sadd.s32 %s57, 1
    %s59 = scalar_select %p56, %s57, %s58
    %p62 = pneg %p56
    %p63 = scmp.eq.s32.totalorder %s9, 1
    %p64 = por %p62, %p63
    %p65 = scmp.ne.s32.totalorder %s57, %s60
    %p66 = scmp.eq.s32.totalorder %s9, 0
    %p67 = por %p65, %p66
    %p68 = scmp.ne.s32.totalorder %s57, %s60
    %p69 = scmp.eq.s32.totalorder %s14, 1
    %p70 = por %p68, %p69
    %p71 = scmp.ne.s32.totalorder %s60, %s61
    %p72 = scmp.eq.s32.totalorder %s14, 0
    %p73 = por %p71, %p72
    %p74 = scmp.ne.s32.totalorder %s60, %s61
    %p75 = scmp.eq.s32.totalorder %s15, 1
    %p76 = por %p74, %p75
    %p78 = scmp.ne.s32.totalorder %s61, %s77
    %p79 = scmp.eq.s32.totalorder %s15, 0
    %p80 = por %p78, %p79
    %s81 = ssub.s32 %s16, %s28
    %p82 = scmp.eq.s32.totalorder %s81, 0
    %s84 = sadd.s32 %s83, 1
    %s85 = scalar_select %p82, %s83, %s84
    %p88 = pneg %p82
    %p89 = scmp.eq.s32.totalorder %s9, 1
    %p90 = por %p88, %p89
    %p91 = scmp.ne.s32.totalorder %s83, %s86
    %p92 = scmp.eq.s32.totalorder %s9, 0
    %p93 = por %p91, %p92
    %p94 = scmp.ne.s32.totalorder %s83, %s86
    %p95 = scmp.eq.s32.totalorder %s14, 1
    %p96 = por %p94, %p95
    %p97 = scmp.ne.s32.totalorder %s86, %s87
    %p98 = scmp.eq.s32.totalorder %s14, 0
    %p99 = por %p97, %p98
    %p100 = scmp.ne.s32.totalorder %s86, %s87
    %p101 = scmp.eq.s32.totalorder %s15, 1
    %p102 = por %p100, %p101
    %p104 = scmp.ne.s32.totalorder %s87, %s103
    %p105 = scmp.eq.s32.totalorder %s15, 0
    %p106 = por %p104, %p105
    %s107 = ssub.s32 %s17, %s24
    %s108 = ssub.s32 %s16, %s28
    %s109 = sor.u32 %s107, %s108
    %p110 = scmp.eq.s32.totalorder %s109, 0
    %s112 = sadd.s32 %s111, 1
    %s113 = scalar_select %p110, %s111, %s112
    %p116 = pneg %p110
    %p117 = scmp.eq.s32.totalorder %s9, 1
    %p118 = por %p116, %p117
    %p119 = scmp.ne.s32.totalorder %s111, %s114
    %p120 = scmp.eq.s32.totalorder %s9, 0
    %p121 = por %p119, %p120
    %p122 = scmp.ne.s32.totalorder %s111, %s114
    %p123 = scmp.eq.s32.totalorder %s14, 1
    %p124 = por %p122, %p123
    %p125 = scmp.ne.s32.totalorder %s114, %s115
    %p126 = scmp.eq.s32.totalorder %s14, 0
    %p127 = por %p125, %p126
    %p128 = scmp.ne.s32.totalorder %s114, %s115
    %p129 = scmp.eq.s32.totalorder %s15, 1
    %p130 = por %p128, %p129
    %p132 = scmp.ne.s32.totalorder %s115, %s131
    %p133 = scmp.eq.s32.totalorder %s15, 0
    %p134 = por %p132, %p133
    %p135 = scmp.le.s32.totalorder 1, %s9
    %p136 = scmp.lt.s32.totalorder %s9, 3
    %p137 = pnand %p135, %p136
    %p138 = pneg %p137
    // Predicated region
    $region9: #{_forward.3} parent=5 // pred_check
      _
    $region10: #{_forward.3} parent=5 // pred_check_branch
      %140 = sbr.rel (%p137) target = $region12
    $region11: #{_forward.3} parent=5 // pred_region
      %s141 = ssub.s32 %s9, 1
      // Predicated region
      $region13: #{_forward.3} parent=11 // pred_check
        %p142 = pneg %p73
      $region14: #{_forward.3} parent=11 // pred_check_branch
        %144 = sbr.rel (%p142) target = $region16
      $region15: #{_forward.3} parent=11 // pred_region
        %p145 = scmp.lt.s32.totalorder %s18, 0
        %s146 = scalar_select %p145, %s18, 0
        %s147 = smul.addr %s146, 4
        %s148 = scalar_lea.vmem %s1, %s147
      $region16: #{_forward.3} parent=11 // pred_fallthru
        _
      // Predicated region
      $region17: #{_forward.3} parent=11 // pred_check
        %p149 = pneg %p99
      $region18: #{_forward.3} parent=11 // pred_check_branch
        %151 = sbr.rel (%p149) target = $region20
      $region19: #{_forward.3} parent=11 // pred_region
        %p152 = scmp.lt.s32.totalorder %s18, 0
        %s153 = scalar_select %p152, %s18, 0
        %s154 = scalar_lea.vmem %s2, %s153
      $region20: #{_forward.3} parent=11 // pred_fallthru
        _
    $region12: #{_forward.3} parent=5 // pred_fallthru
      _
    %p155 = scmp.lt.s32.totalorder %s9, 2
    // Predicated region
    $region21: #{_forward.3} parent=5 // pred_check
      %p156 = pneg %p155
    $region22: #{_forward.3} parent=5 // pred_check_branch
      %158 = sbr.rel (%p156) target = $region24
    $region23: #{_forward.3} parent=5 // pred_region
      // Predicated region
      $region25: #{_forward.3} parent=23 // pred_check
        %p159 = pneg %p41
      $region26: #{_forward.3} parent=23 // pred_check_branch
        %161 = sbr.rel (%p159) target = $region28
      $region27: #{_forward.3} parent=23 // pred_region
        %s162 = smul.u32 8, %s17
        %p163 = scmp.lt.s32.totalorder %s162, 15
        %s164 = scalar_select %p163, %s162, 15
        %s165 = smul.addr %s164, 4
        %s166 = scalar_lea.vmem %s0, %s165
        %s167 = smul.u32 8, %s17
      $region28: #{_forward.3} parent=23 // pred_fallthru
        _
    $region24: #{_forward.3} parent=5 // pred_fallthru
      _
    %p168 = scmp.le.s32.totalorder 1, %s9
    %p169 = scmp.lt.s32.totalorder %s9, 3
    %p170 = pnand %p168, %p169
    %p171 = pneg %p170
    // Predicated region
    $region29: #{_forward.3} parent=5 // pred_check
      _
    $region30: #{_forward.3} parent=5 // pred_check_branch
      %173 = sbr.rel (%p170) target = $region32
    $region31: #{_forward.3} parent=5 // pred_region
      %s174 = ssub.s32 %s9, 1
      %s175 = smul.u32 8, %s19
      %p176 = scmp.lt.s32.totalorder %s175, 15
      %s177 = scalar_select %p176, %s175, 15
      %s178 = smul.addr %s177, 4
      %s179 = scalar_lea.vmem %s0, %s178
      %p180 = pneg %p47
      %p181 = pneg %p44
      %p182 = scmp.lt.s32.totalorder %s18, 0
      %s183 = scalar_select %p182, %s18, 0
      %s184 = smul.addr %s183, 4
      %s185 = scalar_lea.vmem %s1, %s184
      %p186 = pneg %p73
      %p187 = pneg %p70
      %p188 = scmp.lt.s32.totalorder %s18, 0
      %s189 = scalar_select %p188, %s18, 0
      %s190 = scalar_lea.vmem %s2, %s189
      %p191 = pneg %p99
      %p192 = pneg %p96
      %p193 = pneg %p127
      %p194 = pneg %p124
      %s195 = smul.u32 8, %s19
      %p196 = scmp.lt.s32.totalorder %s195, 15
      %s197 = scalar_select %p196, %s195, 15
      %p198 = scmp.lt.s32.totalorder %s18, 0
      %s199 = scalar_select %p198, %s18, 0
      %s200 = sadd.s32 %s199, %s197
      %s201 = smul.addr %s200, 8
      %s202 = scalar_lea.vmem %s3, %s201
      %s203 = smul.u32 8, %s19
      %p204 = scmp.lt.s32.totalorder %s203, 15
      %s205 = scalar_select %p204, %s203, 15
      %s206 = smul.addr %s205, 4
      %s207 = scalar_lea.vmem %s0, %s206
      %s208 = smul.u32 8, %s19
      %p209 = scmp.lt.s32.totalorder %s18, 0
      %s210 = scalar_select %p209, %s18, 0
      %s211 = smul.addr %s210, 4
      %s212 = scalar_lea.vmem %s1, %s211
      %p213 = scmp.lt.s32.totalorder %s18, 0
      %s214 = scalar_select %p213, %s18, 0
      %s215 = scalar_lea.vmem %s2, %s214
      %s216 = smul.u32 8, %s19
      %p217 = scmp.lt.s32.totalorder %s216, 15
      %s218 = scalar_select %p217, %s216, 15
      %p219 = scmp.lt.s32.totalorder %s18, 0
      %s220 = scalar_select %p219, %s18, 0
      %s221 = sadd.s32 %s220, %s218
      %s222 = smul.addr %s221, 8
      %s223 = scalar_lea.vmem %s3, %s222
      %s224 = smul.u32 8, %s19
      %v226 = vld [vmem:[%s207] sm:$0xf]
      %v227 = vld [vmem:[%s207 + $0x4] sm:$0xf]
      %v228 = vld [vmem:[%s207 + $0x8] sm:$0xf]
      %v229 = vld [vmem:[%s207 + $0xc] sm:$0xf]
      %v230 = vld [vmem:[%s207 + $0x10] sm:$0xf]
      %v231 = vld [vmem:[%s207 + $0x14] sm:$0xf]
      %v232 = vld [vmem:[%s207 + $0x18] sm:$0xf]
      %v233 = vld [vmem:[%s207 + $0x1c] sm:$0xf]
      %v234 = vld [vmem:[%s212] sm:$0xf]
      %v235 = vld [vmem:[%s212 + $0x4] sm:$0xf]
      %v236 = vld [vmem:[%s212 + $0x8] sm:$0xf]
      %v237 = vld [vmem:[%s212 + $0xc] sm:$0xf]
      %v238 = vld [vmem:[%s212 + $0x10] sm:$0xf]
      %v239 = vld [vmem:[%s212 + $0x14] sm:$0xf]
      %v240 = vld [vmem:[%s212 + $0x18] sm:$0xf]
      %v241 = vld [vmem:[%s212 + $0x1c] sm:$0xf]
      %v242 = vld [vmem:[%s212 + $0x20] sm:$0xf]
      %v243 = vld [vmem:[%s212 + $0x24] sm:$0xf]
      %v244 = vld [vmem:[%s212 + $0x28] sm:$0xf]
      %v245 = vld [vmem:[%s212 + $0x2c] sm:$0xf]
      %v246 = vld [vmem:[%s212 + $0x30] sm:$0xf]
      %v247 = vld [vmem:[%s212 + $0x34] sm:$0xf]
      %v248 = vld [vmem:[%s212 + $0x38] sm:$0xf]
      %v249 = vld [vmem:[%s212 + $0x3c] sm:$0xf]
      %v250 = vld [vmem:[%s215] sm:$0x1]
      %v252 = vlaneseq
      %v253 = vshrl.u32 %v252, 7
      %v254 = vsub.s32 0, %v253
      %v255 = vrot.slane %v250, %v254
      %v265 = vunpack.c.l.b16 %v226
      %v266 = vunpack.c.l.b16 %v227
      %v267 = vunpack.c.l.b16 %v228
      %v268 = vunpack.c.l.b16 %v229
      %v269 = vunpack.c.l.b16 %v230
      %v270 = vunpack.c.l.b16 %v231
      %v271 = vunpack.c.l.b16 %v232
      %v272 = vunpack.c.l.b16 %v233
      %v273 = vpack.c.b16 %v266, %v265
      %v274 = vpack.c.b16 %v268, %v267
      %v275 = vpack.c.b16 %v270, %v269
      %v276 = vpack.c.b16 %v272, %v271
      %v297 = vunpack.c.l.b16 %v234
      %v298 = vunpack.c.l.b16 %v235
      %v299 = vunpack.c.l.b16 %v236
      %v300 = vunpack.c.l.b16 %v237
      %v301 = vunpack.c.l.b16 %v238
      %v302 = vunpack.c.l.b16 %v239
      %v303 = vunpack.c.l.b16 %v240
      %v304 = vunpack.c.l.b16 %v241
      %v305 = vunpack.c.l.b16 %v242
      %v306 = vunpack.c.l.b16 %v243
      %v307 = vunpack.c.l.b16 %v244
      %v308 = vunpack.c.l.b16 %v245
      %v309 = vunpack.c.l.b16 %v246
      %v310 = vunpack.c.l.b16 %v247
      %v311 = vunpack.c.l.b16 %v248
      %v312 = vunpack.c.l.b16 %v249
      %v313 = vpack.c.b16 %v298, %v297
      %v314 = vpack.c.b16 %v300, %v299
      %v315 = vpack.c.b16 %v302, %v301
      %v316 = vpack.c.b16 %v304, %v303
      %v317 = vpack.c.b16 %v306, %v305
      %v318 = vpack.c.b16 %v308, %v307
      %v319 = vpack.c.b16 %v310, %v309
      %v320 = vpack.c.b16 %v312, %v311
      %329 = vmatprep.subr.bf16.mxu0 0
      %330 = vmatpush1.bf16.msra.mxu0 %v320
      %331 = vmatprep.subr.bf16.mxu0 0
      %332 = vmatpush1.bf16.msra.mxu0 %v319
      %333 = vmatprep.subr.bf16.mxu0 0
      %334 = vmatpush1.bf16.msra.mxu0 %v318
      %335 = vmatprep.subr.bf16.mxu0 0
      %336 = vmatpush1.bf16.msra.mxu0 %v317
      %337 = vmatprep.subr.bf16.mxu0 0
      %338 = vmatpush1.bf16.msra.mxu0 %v316
      %339 = vmatprep.subr.bf16.mxu0 0
      %340 = vmatpush1.bf16.msra.mxu0 %v315
      %341 = vmatprep.subr.bf16.mxu0 0
      %342 = vmatpush1.bf16.msra.mxu0 %v314
      %343 = vmatprep.subr.bf16.mxu0 0
      %344 = vmatpush1.bf16.msra.mxu0 %v313
      %345 = vmatprep.subr.bf16.mxu0 0
      %346 = vmatpush2.bf16.msra.mxu0 0
      %347 = vmatprep.subr.bf16.mxu0 0
      %348 = vmatpush2.bf16.msra.mxu0 0
      %349 = vmatprep.subr.bf16.mxu0 0
      %350 = vmatpush2.bf16.msra.mxu0 0
      %351 = vmatprep.subr.bf16.mxu0 0
      %352 = vmatpush2.bf16.msra.mxu0 0
      %353 = vmatprep.subr.bf16.mxu0 0
      %354 = vmatpush2.bf16.msra.mxu0 0
      %355 = vmatprep.subr.bf16.mxu0 0
      %356 = vmatpush2.bf16.msra.mxu0 0
      %357 = vmatprep.subr.bf16.mxu0 0
      %358 = vmatpush2.bf16.msra.mxu0 0
      %359 = vmatprep.subr.bf16.mxu0 0
      %360 = vmatpush2.bf16.msra.mxu0 0
      %361 = vmatprep.mubr.bf16.mxu0 0
      %362 = vmatmul.mubr.bf16.gmra.mxu0 %v273
      %v363 = vpop.f32.mrf.mxu0
      %v364 = vadd.f32 %v255, %v363
      %v365 = vpop.f32.mrf.mxu0
      %v366 = vpop.f32.mrf.mxu0
      %v367 = vadd.f32 %v255, %v366
      %v368 = vpop.f32.mrf.mxu0
      %369 = vmatprep.mubr.bf16.mxu0 0
      %370 = vmatmul.mubr.bf16.gmra.mxu0 %v274
      %v371 = vpop.f32.mrf.mxu0
      %v372 = vadd.f32 %v255, %v371
      %v373 = vpop.f32.mrf.mxu0
      %v374 = vpop.f32.mrf.mxu0
      %v375 = vadd.f32 %v255, %v374
      %v376 = vpop.f32.mrf.mxu0
      %377 = vmatprep.mubr.bf16.mxu0 0
      %378 = vmatmul.mubr.bf16.gmra.mxu0 %v275
      %v379 = vpop.f32.mrf.mxu0
      %v380 = vadd.f32 %v255, %v379
      %v381 = vpop.f32.mrf.mxu0
      %v382 = vpop.f32.mrf.mxu0
      %v383 = vadd.f32 %v255, %v382
      %v384 = vpop.f32.mrf.mxu0
      %385 = vmatprep.mubr.bf16.mxu0 0
      %386 = vmatmul.mubr.bf16.gmra.mxu0 %v276
      %v387 = vpop.f32.mrf.mxu0
      %v388 = vadd.f32 %v255, %v387
      %v389 = vpop.f32.mrf.mxu0
      %v390 = vpop.f32.mrf.mxu0
      %v391 = vadd.f32 %v255, %v390
      %v392 = vpop.f32.mrf.mxu0
      %393 = vdwg.mxu0
      %v394 = vmax.f32 %v364, 0.0
      %v395 = vmax.f32 %v367, 0.0
      %v396 = vmax.f32 %v372, 0.0
      %v397 = vmax.f32 %v375, 0.0
      %v398 = vmax.f32 %v380, 0.0
      %v399 = vmax.f32 %v383, 0.0
      %v400 = vmax.f32 %v388, 0.0
      %v401 = vmax.f32 %v391, 0.0
      %402 = vst [vmem:[%s223] sm:$0xff] %v394
      %403 = vst [vmem:[%s223 + $0x8] sm:$0xff] %v395
      %404 = vst [vmem:[%s223 + $0x10] sm:$0xff] %v396
      %405 = vst [vmem:[%s223 + $0x18] sm:$0xff] %v397
      %406 = vst [vmem:[%s223 + $0x20] sm:$0xff] %v398
      %407 = vst [vmem:[%s223 + $0x28] sm:$0xff] %v399
      %408 = vst [vmem:[%s223 + $0x30] sm:$0xff] %v400
      %409 = vst [vmem:[%s223 + $0x38] sm:$0xff] %v401
      %s410 = smul.u32 8, %s19
      %p411 = scmp.lt.s32.totalorder %s410, 15
      %s412 = scalar_select %p411, %s410, 15
      %p413 = scmp.lt.s32.totalorder %s18, 0
      %s414 = scalar_select %p413, %s18, 0
      %s415 = sadd.s32 %s414, %s412
      %s416 = smul.addr %s415, 8
      %s417 = scalar_lea.vmem %s3, %s416
      // Predicated region
      $region33: #{_forward.3} parent=31 // pred_check
        %p418 = pneg %p124
      $region34: #{_forward.3} parent=31 // pred_check_branch
        %420 = sbr.rel (%p418) target = $region36
      $region35: #{_forward.3} parent=31 // pred_region
        %s421 = smul.u32 8, %s19
      $region36: #{_forward.3} parent=31 // pred_fallthru
        _
    $region32: #{_forward.3} parent=5 // pred_fallthru
      _
    %p422 = scmp.le.s32.totalorder 2, %s9
    // Predicated region
    $region37: #{_forward.3} parent=5 // pred_check
      %p423 = pneg %p422
    $region38: #{_forward.3} parent=5 // pred_check_branch
      %425 = sbr.rel (%p423) target = $region40
    $region39: #{_forward.3} parent=5 // pred_region
      %s426 = ssub.s32 %s9, 2
      // Predicated region
      $region41: #{_forward.3} parent=39 // pred_check
        %p427 = pneg %p130
      $region42: #{_forward.3} parent=39 // pred_check_branch
        %429 = sbr.rel (%p427) target = $region44
      $region43: #{_forward.3} parent=39 // pred_region
        %s430 = smul.u32 8, %s21
        %p431 = scmp.lt.s32.totalorder %s430, 15
        %s432 = scalar_select %p431, %s430, 15
        %p433 = scmp.lt.s32.totalorder %s20, 0
        %s434 = scalar_select %p433, %s20, 0
        %s435 = sadd.s32 %s434, %s432
        %s436 = smul.addr %s435, 8
        %s437 = scalar_lea.vmem %s3, %s436
      $region44: #{_forward.3} parent=39 // pred_fallthru
        _
    $region40: #{_forward.3} parent=5 // pred_fallthru
      _
  $region6: #{_forward.3} parent=0 // loop_footer
    %s13 = sadd.s32 1, %s9
  $region7: #{_forward.3} parent=0 // loop_footer_branch
    %8 = sbr.rel target = $region3
  $region8: #{_forward.3} parent=0 // loop_exit
    _

</llo_original>
